<compile_context>
chip_gen: v5e
topology: v5e:2x2
jax: 0.10.0
libtpu: 0.0.40
codegen_flags: <defaults>
</compile_context>

<pallas_src>
import functools

import jax
import jax.numpy as jnp
from jax.experimental import pallas as pl
from jax.experimental.pallas import tpu as pltpu


def _round_up(x: int, m: int) -> int:
    return (x + m - 1) // m * m


def _sublane(dtype) -> int:
    # Native sublane count per vreg: 8 for f32, 16 for bf16, 32 for int8/fp8.
    return max(8, 32 // jnp.dtype(dtype).itemsize)


def _vmem_cap_bytes() -> int:
    """~0.75x physical VMEM of the current chip (48 MiB fallback, safe on v7x)."""
    try:
        return int(0.75 * pltpu.get_tpu_info().vmem_capacity_bytes)
    except Exception:
        return 48 * 1024 * 1024


@functools.lru_cache(maxsize=None)
def _single_buffer_weights_supported() -> bool:
    """Probe whether pipeline_mode=pl.Buffered(1) compiles/runs on this jax."""
    try:
        def _probe(a_ref, b_ref, o_ref):
            o_ref[...] = a_ref[...] + b_ref[...]

        f = pl.pallas_call(
            _probe,
            out_shape=jax.ShapeDtypeStruct((16, 128), jnp.float32),
            grid=(2,),
            in_specs=[
                pl.BlockSpec((8, 128), lambda i: (0, 0),
                             pipeline_mode=pl.Buffered(1)),
                pl.BlockSpec((8, 128), lambda i: (i, 0)),
            ],
            out_specs=pl.BlockSpec((8, 128), lambda i: (i, 0)),
        )
        out = jax.block_until_ready(
            f(jnp.ones((8, 128), jnp.float32), jnp.zeros((16, 128), jnp.float32))
        )
        return bool(jnp.all(out == 1.0))
    except Exception:
        return False


def _mlp_chain_kernel(x_ref, *rest):
    """One batch tile through a chain of pre-transposed (K, N) weights."""
    w_refs, o_ref = rest[:-1], rest[-1]
    h = x_ref[...]
    for w_ref in w_refs:
        w = w_ref[...]
        # bf16 (compute-dtype) operands on the MXU, f32 accumulation; the cast
        # keeps every layer after the first on the fast bf16 path.
        h = jnp.dot(h.astype(w.dtype), w, preferred_element_type=jnp.float32)
    o_ref[...] = h.astype(o_ref.dtype)


def _choose_batch_tiling(M: int, sublane: int, tm_target: int = 256):
    """Return (m_pad, tm)."""
    m_pad = _round_up(M, sublane)
    if m_pad < 2 * 128:
        return m_pad, m_pad  # tiny batch: single lane-aligned block
    # Large batch: >=128-row tiles, target 256, and guarantee >=2 grid steps so
    # the "parallel" axis can shard across the two v7x TensorCores.
    tm = min(tm_target, 128 * max(1, m_pad // (2 * 128)))
    m_pad = _round_up(m_pad, tm)
    return m_pad, tm


def _group_layers(weights, *, weight_budget: int, single_buffer: bool):
    """Greedily split the layer chain so each group's weights fit in VMEM."""
    w_factor = 1 if single_buffer else 2
    groups, cur, cur_b = [], [], 0
    for w in weights:
        wb = w_factor * w.size * jnp.dtype(w.dtype).itemsize
        if cur and cur_b + wb > weight_budget:
            groups.append(cur)
            cur, cur_b = [], 0
        cur.append(w)
        cur_b += wb
    if cur:
        groups.append(cur)
    return groups


def _call_group(x_pad, weights, *, tm, out_dtype, single_buffer, vmem_cap):
    m_pad, kp0 = x_pad.shape
    np_last = weights[-1].shape[1]
    grid = (m_pad // tm,)

    w_kwargs = {"pipeline_mode": pl.Buffered(1)} if single_buffer else {}

    in_specs = [pl.BlockSpec((tm, kp0), lambda i: (i, 0))]
    for w in weights:
        kp, npd = w.shape
        # Whole-array weight block, constant across the batch axis (VMEM-resident).
        in_specs.append(pl.BlockSpec((kp, npd), lambda i: (0, 0), **w_kwargs))
    out_specs = pl.BlockSpec((tm, np_last), lambda i: (i, 0))

    x_isz = jnp.dtype(x_pad.dtype).itemsize
    o_isz = jnp.dtype(out_dtype).itemsize
    weight_bytes = sum(w.size * jnp.dtype(w.dtype).itemsize for w in weights)
    w_factor = 1 if single_buffer else 2
    max_w = max([kp0] + [w.shape[1] for w in weights])
    io_bytes = 2 * (tm * kp0 * x_isz + tm * np_last * o_isz)   # double-buffered x/out
    act_bytes = 2 * tm * max_w * 4                             # spilled f32 intermediate
    vmem_bytes = w_factor * weight_bytes + io_bytes + act_bytes + (2 << 20)
    vmem_bytes = int(min(max(vmem_bytes, 4 << 20), vmem_cap))

    flops = 2 * m_pad * sum(w.shape[0] * w.shape[1] for w in weights)
    bytes_accessed = (x_pad.size * x_isz + weight_bytes + m_pad * np_last * o_isz)

    return pl.pallas_call(
        _mlp_chain_kernel,
        out_shape=jax.ShapeDtypeStruct((m_pad, np_last), out_dtype),
        grid_spec=pltpu.PrefetchScalarGridSpec(
            num_scalar_prefetch=0,
            grid=grid,
            in_specs=in_specs,
            out_specs=out_specs,
        ),
        compiler_params=pltpu.CompilerParams(
            dimension_semantics=("parallel",),
            vmem_limit_bytes=vmem_bytes,
        ),
        cost_estimate=pl.CostEstimate(
            flops=flops, transcendentals=0, bytes_accessed=bytes_accessed
        ),
    )(x_pad, *weights)


@functools.partial(
    jax.jit, static_argnames=("out_features", "compute_dtype", "single_buffer")
)
def _fused_mlp_forward(x, weights_t, *, out_features, compute_dtype, single_buffer):
    """Fused chain of bias-free linears.

    x:         (M, K0)
    weights_t: tuple of pre-transposed, 128-padded weights w_i: (Kp_i, Np_i),
               Np_i == Kp_{i+1}, stored in the compute dtype.
    """
    M, K = x.shape
    out_dtype = x.dtype
    kp0 = weights_t[0].shape[0]
    np_last = weights_t[-1].shape[1]

    sublane = _sublane(compute_dtype)
    m_pad, tm = _choose_batch_tiling(M, sublane)

    vmem_cap = _vmem_cap_bytes()
    max_w = max([kp0] + [w.shape[1] for w in weights_t])
    overhead = 4 * tm * max_w * 4 + (2 << 20)
    weight_budget = max(vmem_cap - overhead, 4 << 20)
    groups = _group_layers(
        weights_t, weight_budget=weight_budget, single_buffer=single_buffer
    )

    # Pad once (rows to the batch tile, features to padded K of layer 0) and
    # cast to the MXU compute dtype; skipped when already aligned.
    h = x.astype(compute_dtype)
    if (m_pad, kp0) != (M, K):
        h = jnp.pad(h, ((0, m_pad - M), (0, kp0 - K)))

    for gi, gw in enumerate(groups):
        is_last = gi == len(groups) - 1
        h = _call_group(
            h,
            tuple(gw),
            tm=tm,
            out_dtype=out_dtype if is_last else compute_dtype,
            single_buffer=single_buffer,
            vmem_cap=vmem_cap,
        )

    if (m_pad, np_last) != (M, out_features):
        h = h[:M, :out_features]
    return h


class NaivePipeMLPPallas:
    """JAX/Pallas equivalent of NaivePipeMLP: all pipeline stages fused locally."""

    def __init__(self, sizes, activations, world_size, dtype=jnp.float32,
                 compute_dtype=jnp.bfloat16):
        assert len(sizes) == world_size
        assert len(activations) == world_size
        self.dtype = jnp.dtype(dtype)
        self.compute_dtype = jnp.dtype(compute_dtype)
        # LDLinear init: weight = 0.5 * ones((out_features, in_features)), bias=False
        self.weights = []            # original (out, in) layout, full precision
        self.weights_t_padded = []   # (K, N), zero-padded to 128, compute dtype
        for rank in range(world_size):
            node_sizes = sizes[rank]
            for i in range(len(node_sizes) - 1):
                in_f, out_f = node_sizes[i], node_sizes[i + 1]
                w = jnp.full((out_f, in_f), 0.5, dtype=self.dtype)
                self.weights.append(w)
                kp, npd = _round_up(in_f, 128), _round_up(out_f, 128)
                wt = jnp.zeros((kp, npd), dtype=self.compute_dtype)
                wt = wt.at[:in_f, :out_f].set(w.T.astype(self.compute_dtype))
                self.weights_t_padded.append(wt)
        self.in_features = sizes[0][0]
        self.out_features = sizes[-1][-1]

    def forward(self, x):
        # Simulated pipeline: every rank's stage runs in the same fused kernel
        # chain (identical math to the multi-rank send/recv pipeline).
        single_buffer = _single_buffer_weights_supported()
        return _fused_mlp_forward(
            x,
            tuple(self.weights_t_padded),
            out_features=self.out_features,
            compute_dtype=self.compute_dtype,
            single_buffer=single_buffer,
        )

    def reference(self, x):
        """Matches the kernel's numerics: compute-dtype operands, f32 accumulation."""
        h = x.astype(self.compute_dtype)
        n = len(self.weights)
        for i, w in enumerate(self.weights):
            h = jnp.dot(h, w.T.astype(self.compute_dtype),
                        preferred_element_type=jnp.float32)
            if i < n - 1:
                h = h.astype(self.compute_dtype)
        return h.astype(x.dtype)

    def reference_f32(self, x):
        """Exact float32 reference (matches the PyTorch module's math)."""
        h = x
        for w in self.weights:
            h = jnp.matmul(h, w.T, precision=jax.lax.Precision.HIGHEST)
        return h


if __name__ == "__main__":
    world_size = 2
    sizes = [[128, 256, 128], [128, 128, 32]]   # sizes[rank][-1] == sizes[rank+1][0]
    activations = ["relu", "relu"]              # unused in forward (matches the PyTorch module)

    key = jax.random.PRNGKey(0)
    batch = 8
    x = jax.random.normal(key, (batch, sizes[0][0]), dtype=jnp.float32)

    # 1) Exact path: f32 compute vs. the plain f32 reference.
    model_f32 = NaivePipeMLPPallas(sizes, activations, world_size,
                                   dtype=jnp.float32, compute_dtype=jnp.float32)
    out_f32 = jax.block_until_ready(model_f32.forward(x))
    ref_f32 = model_f32.reference_f32(x)
    assert out_f32.shape == (batch, sizes[-1][-1]), out_f32.shape
    assert jnp.allclose(out_f32, ref_f32, rtol=1e-4, atol=1e-3), "f32 path mismatch"

    # 2) Fast path: bf16 operands on the MXU with f32 accumulation,
    #    checked against a matched-precision reference.
    model = NaivePipeMLPPallas(sizes, activations, world_size,
                               dtype=jnp.float32, compute_dtype=jnp.bfloat16)
    out = jax.block_until_ready(model.forward(x))
    ref = model.reference(x)
    assert out.shape == (batch, sizes[-1][-1]), out.shape
    assert jnp.allclose(out, ref, rtol=2.5e-2, atol=1e-2), "bf16 path mismatch"

    print("KERNEL_OK")
</pallas_src>

<mosaic_0001>
module attributes {stable_mosaic.version = 11 : i64} {
  func.func @_probe(%arg0: i32, %arg1: memref<8x128xf32, #tpu.memory_space<vmem>>, %arg2: memref<8x128xf32, #tpu.memory_space<vmem>>, %arg3: memref<8x128xf32, #tpu.memory_space<vmem>>) attributes {dimension_semantics = [#tpu.dimension_semantics<arbitrary>], iteration_bounds = array<i64: 2>, scalar_prefetch = 0 : i64, scratch_operands = 0 : i64, tpu.core_type = #tpu.core_type<tc>, window_params = [{pipeline_mode = #tpu.pipeline_mode<synchronous>, transform_indices = @transform_0, window_bounds = array<i64: 8, 128>}, {transform_indices = @transform_1, window_bounds = array<i64: 8, 128>}, {transform_indices = @transform_2, window_bounds = array<i64: 8, 128>}]} {
    %c0 = arith.constant 0 : index
    %c0_0 = arith.constant 0 : index
    %0 = vector.load %arg1[%c0, %c0_0] : memref<8x128xf32, #tpu.memory_space<vmem>>, vector<8x128xf32>
    %c0_1 = arith.constant 0 : index
    %c0_2 = arith.constant 0 : index
    %1 = vector.load %arg2[%c0_1, %c0_2] : memref<8x128xf32, #tpu.memory_space<vmem>>, vector<8x128xf32>
    %2 = arith.addf %0, %1 : vector<8x128xf32>
    %c0_3 = arith.constant 0 : index
    %c0_4 = arith.constant 0 : index
    %3 = vector.load %arg3[%c0_3, %c0_4] : memref<8x128xf32, #tpu.memory_space<vmem>>, vector<8x128xf32>
    tpu.vector_store %arg3[%c0_3, %c0_4], %2 {strides = array<i32>} : memref<8x128xf32, #tpu.memory_space<vmem>>, vector<8x128xf32>,
    return
  }
  func.func @transform_0(%arg0: i32) -> (i32, i32) {
    %c0_i32 = arith.constant 0 : i32
    %c0_i32_0 = arith.constant 0 : i32
    %c0_i32_1 = arith.constant 0 : i32
    return %c0_i32, %c0_i32_0 : i32, i32
  }
  func.func @transform_1(%arg0: i32) -> (i32, i32) {
    %c0_i32 = arith.constant 0 : i32
    %c0_i32_0 = arith.constant 0 : i32
    return %arg0, %c0_i32 : i32, i32
  }
  func.func @transform_2(%arg0: i32) -> (i32, i32) {
    %c0_i32 = arith.constant 0 : i32
    %c0_i32_0 = arith.constant 0 : i32
    return %arg0, %c0_i32 : i32, i32
  }
}

module attributes {stable_mosaic.version = 11 : i64} {
  func.func @_mlp_chain_kernel(%arg0: i32, %arg1: memref<8x128xf32, #tpu.memory_space<vmem>>, %arg2: memref<128x256xf32, #tpu.memory_space<vmem>>, %arg3: memref<256x128xf32, #tpu.memory_space<vmem>>, %arg4: memref<128x128xf32, #tpu.memory_space<vmem>>, %arg5: memref<128x128xf32, #tpu.memory_space<vmem>>, %arg6: memref<8x128xf32, #tpu.memory_space<vmem>>) attributes {dimension_semantics = [#tpu.dimension_semantics<parallel>], iteration_bounds = array<i64: 1>, scalar_prefetch = 0 : i64, scratch_operands = 0 : i64, tpu.core_type = #tpu.core_type<tc>, window_params = [{transform_indices = @transform_0, window_bounds = array<i64: 8, 128>}, {pipeline_mode = #tpu.pipeline_mode<synchronous>, transform_indices = @transform_1, window_bounds = array<i64: 128, 256>}, {pipeline_mode = #tpu.pipeline_mode<synchronous>, transform_indices = @transform_2, window_bounds = array<i64: 256, 128>}, {pipeline_mode = #tpu.pipeline_mode<synchronous>, transform_indices = @transform_3, window_bounds = array<i64: 128, 128>}, {pipeline_mode = #tpu.pipeline_mode<synchronous>, transform_indices = @transform_4, window_bounds = array<i64: 128, 128>}, {transform_indices = @transform_5, window_bounds = array<i64: 8, 128>}]} {
    %c0 = arith.constant 0 : index
    %c0_0 = arith.constant 0 : index
    %0 = vector.load %arg1[%c0, %c0_0] : memref<8x128xf32, #tpu.memory_space<vmem>>, vector<8x128xf32>
    %c0_1 = arith.constant 0 : index
    %c0_2 = arith.constant 0 : index
    %1 = vector.load %arg2[%c0_1, %c0_2] : memref<128x256xf32, #tpu.memory_space<vmem>>, vector<128x256xf32>
    %cst = arith.constant dense<0.000000e+00> : vector<8x256xf32>
    %2 = tpu.matmul %0, %1, %cst {dimension_numbers = #tpu.dot_dimension_numbers<[1], [0], [0], [1], [0, 0, 1, 1], [], []>} : vector<8x128xf32>, vector<128x256xf32>, vector<8x256xf32> -> vector<8x256xf32>
    %c0_3 = arith.constant 0 : index
    %c0_4 = arith.constant 0 : index
    %3 = vector.load %arg3[%c0_3, %c0_4] : memref<256x128xf32, #tpu.memory_space<vmem>>, vector<256x128xf32>
    %cst_5 = arith.constant dense<0.000000e+00> : vector<8x128xf32>
    %4 = tpu.matmul %2, %3, %cst_5 {dimension_numbers = #tpu.dot_dimension_numbers<[1], [0], [0], [1], [0, 0, 1, 1], [], []>} : vector<8x256xf32>, vector<256x128xf32>, vector<8x128xf32> -> vector<8x128xf32>
    %c0_6 = arith.constant 0 : index
    %c0_7 = arith.constant 0 : index
    %5 = vector.load %arg4[%c0_6, %c0_7] : memref<128x128xf32, #tpu.memory_space<vmem>>, vector<128x128xf32>
    %cst_8 = arith.constant dense<0.000000e+00> : vector<8x128xf32>
    %6 = tpu.matmul %4, %5, %cst_8 {dimension_numbers = #tpu.dot_dimension_numbers<[1], [0], [0], [1], [0, 0, 1, 1], [], []>} : vector<8x128xf32>, vector<128x128xf32>, vector<8x128xf32> -> vector<8x128xf32>
    %c0_9 = arith.constant 0 : index
    %c0_10 = arith.constant 0 : index
    %7 = vector.load %arg5[%c0_9, %c0_10] : memref<128x128xf32, #tpu.memory_space<vmem>>, vector<128x128xf32>
    %cst_11 = arith.constant dense<0.000000e+00> : vector<8x128xf32>
    %8 = tpu.matmul %6, %7, %cst_11 {dimension_numbers = #tpu.dot_dimension_numbers<[1], [0], [0], [1], [0, 0, 1, 1], [], []>} : vector<8x128xf32>, vector<128x128xf32>, vector<8x128xf32> -> vector<8x128xf32>
    %c0_12 = arith.constant 0 : index
    %c0_13 = arith.constant 0 : index
    %9 = vector.load %arg6[%c0_12, %c0_13] : memref<8x128xf32, #tpu.memory_space<vmem>>, vector<8x128xf32>
    tpu.vector_store %arg6[%c0_12, %c0_13], %8 {strides = array<i32>} : memref<8x128xf32, #tpu.memory_space<vmem>>, vector<8x128xf32>,
    return
  }
  func.func @transform_0(%arg0: i32) -> (i32, i32) {
    %c0_i32 = arith.constant 0 : i32
    %c0_i32_0 = arith.constant 0 : i32
    return %arg0, %c0_i32 : i32, i32
  }
  func.func @transform_1(%arg0: i32) -> (i32, i32) {
    %c0_i32 = arith.constant 0 : i32
    %c0_i32_0 = arith.constant 0 : i32
    %c0_i32_1 = arith.constant 0 : i32
    return %c0_i32, %c0_i32_0 : i32, i32
  }
  func.func @transform_2(%arg0: i32) -> (i32, i32) {
    %c0_i32 = arith.constant 0 : i32
    %c0_i32_0 = arith.constant 0 : i32
    %c0_i32_1 = arith.constant 0 : i32
    return %c0_i32, %c0_i32_0 : i32, i32
  }
  func.func @transform_3(%arg0: i32) -> (i32, i32) {
    %c0_i32 = arith.constant 0 : i32
    %c0_i32_0 = arith.constant 0 : i32
    %c0_i32_1 = arith.constant 0 : i32
    return %c0_i32, %c0_i32_0 : i32, i32
  }
  func.func @transform_4(%arg0: i32) -> (i32, i32) {
    %c0_i32 = arith.constant 0 : i32
    %c0_i32_0 = arith.constant 0 : i32
    %c0_i32_1 = arith.constant 0 : i32
    return %c0_i32, %c0_i32_0 : i32, i32
  }
  func.func @transform_5(%arg0: i32) -> (i32, i32) {
    %c0_i32 = arith.constant 0 : i32
    %c0_i32_0 = arith.constant 0 : i32
    return %arg0, %c0_i32 : i32, i32
  }
}

</mosaic_0001>

<llo_original>
// kernel: tpu_custom_call.1
$region0: #{tpu_custom_call.1}
  #allocation0 [shape = 'u32[]', space=smem, size = 0x4, offset = 0x4, fixed_abs, tag = 'smem constant byte address 0x4 - core index']
  #allocation1 [shape = 'u32[72,128]{1,0:T(1,128)}', space=vmem, size = 0x9000, scoped, tag = 'internal scratch']
  %s0 = inlined_call_operand.hbm [shape: f32[8,128], index: 0, kind: input, shape index: {}]
  %s1 = inlined_call_operand.hbm [shape: f32[16,128], index: 1, kind: input, shape index: {}]
  %s2 = inlined_call_operand.hbm [shape: f32[16,128], index: 2, kind: output, shape index: {}]
  %s3 = sld [smem:[#allocation0]]
  $region49: #{tpu_custom_call.1} parent=0
    _
  %s5 = ssub.s32 1, %s3
  %s6 = scalar_select 0, %s5, %s3
  $region1: #{tpu_custom_call.1} parent=0
    #allocation2 [shape = 'u8[4096]{0}', space=vmem, size = 0x1000, scoped, tag = 'input window, operand 0, single buffered']
    #allocation3 [shape = 's32[2]{0}', space=sflag, size = 0x8, scoped, tag = 'scoped memory for tpu_custom_call.1']
    #allocation4 [shape = 's32[2]{0}', space=sflag, size = 0x8, scoped, tag = 'scoped memory for tpu_custom_call.1']
    #allocation5 [shape = 'u8[8192]{0}', space=vmem, size = 0x2000, scoped, tag = 'input window, operand 1']
    #allocation6 [shape = 's32[2]{0}', space=sflag, size = 0x8, scoped, tag = 'scoped memory for tpu_custom_call.1']
    #allocation7 [shape = 'u8[8192]{0}', space=vmem, size = 0x2000, scoped, tag = 'output window, operand 0']
    %7 = vsyncpa [#allocation3], 0
    %8 = vsyncpa [#allocation6], 0
    %s9 = scalar_lea.sflag [#allocation6], 1
    %10 = vsyncpa %s9, 0
    %11 = vsyncpa [#allocation4], 0
    %s12 = scalar_lea.sflag [#allocation4], 1
    %13 = vsyncpa %s12, 0
    loop: start=0, step=1, limit=4
    $region2: #{tpu_custom_call.1} parent=1 // loop_pre_header
      _
    $region3: #{tpu_custom_call.1} parent=1 // loop_header
      %s15 = sphi 0, %s19
      %p16 = scmp.ge.s32.totalorder %s15, 4
      %s23 = sphi 0, %s23
      %s25 = sphi 0, %s23
      %s26 = sphi 0, %s25
      %s40 = sphi 0, %s26
      %s46 = sphi 0, %s48
      %s49 = sphi 0, %s46
      %s50 = sphi 0, %s49
      %s66 = sphi 0, %s50
      %s72 = sphi 0, %s74
      %s75 = sphi 0, %s72
      %s76 = sphi 0, %s75
      %s92 = sphi 0, %s76
    $region4: #{tpu_custom_call.1} parent=1 // loop_header_branch
      %18 = sbr.rel (%p16) target = $region8
    $region5: #{tpu_custom_call.1} parent=1 // loop_body
      %s20 = ssub.s32 %s15, 1
      %s21 = ssub.s32 %s15, 2
      %s22 = sadd.s32 %s15, 1
      %s24 = sadd.s32 %s23, 1
      %p27 = scmp.eq.s32.totalorder %s15, 1
      %p28 = scmp.ne.s32.totalorder %s23, %s25
      %p29 = scmp.eq.s32.totalorder %s15, 0
      %p30 = por %p28, %p29
      %p31 = scmp.ne.s32.totalorder %s23, %s25
      %p32 = scmp.eq.s32.totalorder %s20, 1
      %p33 = por %p31, %p32
      %p34 = scmp.ne.s32.totalorder %s25, %s26
      %p35 = scmp.eq.s32.totalorder %s20, 0
      %p36 = por %p34, %p35
      %p37 = scmp.ne.s32.totalorder %s25, %s26
      %p38 = scmp.eq.s32.totalorder %s21, 1
      %p39 = por %p37, %p38
      %p41 = scmp.ne.s32.totalorder %s26, %s40
      %p42 = scmp.eq.s32.totalorder %s21, 0
      %p43 = por %p41, %p42
      %s44 = ssub.s32 %s15, %s22
      %p45 = scmp.eq.s32.totalorder %s44, 0
      %s47 = sadd.s32 %s46, 1
      %s48 = scalar_select %p45, %s46, %s47
      %p51 = pneg %p45
      %p52 = scmp.eq.s32.totalorder %s15, 1
      %p53 = por %p51, %p52
      %p54 = scmp.ne.s32.totalorder %s46, %s49
      %p55 = scmp.eq.s32.totalorder %s15, 0
      %p56 = por %p54, %p55
      %p57 = scmp.ne.s32.totalorder %s46, %s49
      %p58 = scmp.eq.s32.totalorder %s20, 1
      %p59 = por %p57, %p58
      %p60 = scmp.ne.s32.totalorder %s49, %s50
      %p61 = scmp.eq.s32.totalorder %s20, 0
      %p62 = por %p60, %p61
      %p63 = scmp.ne.s32.totalorder %s49, %s50
      %p64 = scmp.eq.s32.totalorder %s21, 1
      %p65 = por %p63, %p64
      %p67 = scmp.ne.s32.totalorder %s50, %s66
      %p68 = scmp.eq.s32.totalorder %s21, 0
      %p69 = por %p67, %p68
      %s70 = ssub.s32 %s15, %s22
      %p71 = scmp.eq.s32.totalorder %s70, 0
      %s73 = sadd.s32 %s72, 1
      %s74 = scalar_select %p71, %s72, %s73
      %p77 = pneg %p71
      %p78 = scmp.eq.s32.totalorder %s15, 1
      %p79 = por %p77, %p78
      %p80 = scmp.ne.s32.totalorder %s72, %s75
      %p81 = scmp.eq.s32.totalorder %s15, 0
      %p82 = por %p80, %p81
      %p83 = scmp.ne.s32.totalorder %s72, %s75
      %p84 = scmp.eq.s32.totalorder %s20, 1
      %p85 = por %p83, %p84
      %p86 = scmp.ne.s32.totalorder %s75, %s76
      %p87 = scmp.eq.s32.totalorder %s20, 0
      %p88 = por %p86, %p87
      %p89 = scmp.ne.s32.totalorder %s75, %s76
      %p90 = scmp.eq.s32.totalorder %s21, 1
      %p91 = por %p89, %p90
      %p93 = scmp.ne.s32.totalorder %s76, %s92
      %p94 = scmp.eq.s32.totalorder %s21, 0
      %p95 = por %p93, %p94
      %p96 = scmp.le.s32.totalorder 1, %s15
      %p97 = scmp.lt.s32.totalorder %s15, 3
      %p98 = pnand %p96, %p97
      %p99 = pneg %p98
      // Predicated region
      $region9: #{tpu_custom_call.1} parent=5 // pred_check
        _
      $region10: #{tpu_custom_call.1} parent=5 // pred_check_branch
        %101 = sbr.rel (%p98) target = $region12
      $region11: #{tpu_custom_call.1} parent=5 // pred_region
        %s102 = ssub.s32 %s15, 1
        // Predicated region
        $region13: #{tpu_custom_call.1} parent=11 // pred_check
          %p103 = pneg %p36
        $region14: #{tpu_custom_call.1} parent=11 // pred_check_branch
          %105 = sbr.rel (%p103) target = $region16
        $region15: #{tpu_custom_call.1} parent=11 // pred_region
          %107 = vsyncadd [#allocation3], 0
          %s109 = sshll.u32 %s0, 4
          %s110 = int_to_ptr.hbm [resolvable:$true] %s109
          %s111 = sshll.u32 [#allocation2], 4
          %s112 = int_to_ptr.vmem [resolvable:$true] %s111
          %114 = dma.hbm_to_vmem [thread:$0]  %s110, 128, %s112, [#allocation3]
        $region16: #{tpu_custom_call.1} parent=11 // pred_fallthru
          _
      $region12: #{tpu_custom_call.1} parent=5 // pred_fallthru
        _
      %p115 = scmp.lt.s32.totalorder %s15, 2
      // Predicated region
      $region17: #{tpu_custom_call.1} parent=5 // pred_check
        %p116 = pneg %p115
      $region18: #{tpu_custom_call.1} parent=5 // pred_check_branch
        %118 = sbr.rel (%p116) target = $region20
      $region19: #{tpu_custom_call.1} parent=5 // pred_region
        // Predicated region
        $region21: #{tpu_custom_call.1} parent=19 // pred_check
          %p119 = pneg %p56
        $region22: #{tpu_custom_call.1} parent=19 // pred_check_branch
          %121 = sbr.rel (%p119) target = $region24
        $region23: #{tpu_custom_call.1} parent=19 // pred_region
          %s122 = sand.u32 %s46, 1
          %s123 = scalar_lea.sflag [#allocation6], %s122
          %s124 = sand.u32 %s46, 1
          %s125 = smul.addr %s124, 8
          %s126 = scalar_lea.vmem [#allocation5], %s125
          %128 = vsyncadd %s123, 0
          %s129 = smul.addr %s15, 8
          %s130 = scalar_lea.hbm %s1, %s129
          %s132 = sshll.u32 %s130, 4
          %s133 = int_to_ptr.hbm [resolvable:$true] %s132
          %s134 = sshll.u32 %s126, 4
          %s135 = int_to_ptr.vmem [resolvable:$true] %s134
          %137 = dma.hbm_to_vmem [thread:$0]  %s133, 128, %s135, %s123
        $region24: #{tpu_custom_call.1} parent=19 // pred_fallthru
          _
      $region20: #{tpu_custom_call.1} parent=5 // pred_fallthru
        _
      %p138 = scmp.le.s32.totalorder 1, %s15
      %p139 = scmp.lt.s32.totalorder %s15, 3
      %p140 = pnand %p138, %p139
      %p141 = pneg %p140
      // Predicated region
      $region25: #{tpu_custom_call.1} parent=5 // pred_check
        _
      $region26: #{tpu_custom_call.1} parent=5 // pred_check_branch
        %143 = sbr.rel (%p140) target = $region28
      $region27: #{tpu_custom_call.1} parent=5 // pred_region
        %s144 = ssub.s32 %s15, 1
        // Predicated region
        $region29: #{tpu_custom_call.1} parent=27 // pred_check
          %p145 = pneg %p36
        $region30: #{tpu_custom_call.1} parent=27 // pred_check_branch
          %147 = sbr.rel (%p145) target = $region32
        $region31: #{tpu_custom_call.1} parent=27 // pred_region
          %149 = dma.done [#allocation3], 128
        $region32: #{tpu_custom_call.1} parent=27 // pred_fallthru
          _
        %s150 = sand.u32 %s49, 1
        %s151 = scalar_lea.sflag [#allocation6], %s150
        %s152 = sand.u32 %s49, 1
        %s153 = smul.addr %s152, 8
        %s154 = scalar_lea.vmem [#allocation5], %s153
        // Predicated region
        $region33: #{tpu_custom_call.1} parent=27 // pred_check
          %p155 = pneg %p62
        $region34: #{tpu_custom_call.1} parent=27 // pred_check_branch
          %157 = sbr.rel (%p155) target = $region36
        $region35: #{tpu_custom_call.1} parent=27 // pred_region
          %159 = dma.done %s151, 128
        $region36: #{tpu_custom_call.1} parent=27 // pred_fallthru
          _
        %p160 = pneg %p36
        %p161 = pneg %p33
        %s162 = sand.u32 %s49, 1
        %s163 = scalar_lea.sflag [#allocation6], %s162
        %s164 = sand.u32 %s49, 1
        %s165 = smul.addr %s164, 8
        %s166 = scalar_lea.vmem [#allocation5], %s165
        %p167 = pneg %p62
        %p168 = pneg %p59
        %p169 = pneg %p88
        %p170 = pneg %p85
        %s171 = sand.u32 %s75, 1
        %s172 = scalar_lea.sflag [#allocation4], %s171
        %s173 = sand.u32 %s75, 1
        %s174 = smul.addr %s173, 8
        %s175 = scalar_lea.vmem [#allocation7], %s174
        %v176 = vld [vmem:[#allocation2] sm:$0xff]
        %v177 = vld [vmem:[%s154] sm:$0xff]
        %v178 = vadd.f32 %v176, %v177
        %179 = vst [vmem:[%s175] sm:$0xff] %v178
        %s180 = sand.u32 %s75, 1
        %s181 = scalar_lea.sflag [#allocation4], %s180
        %s182 = sand.u32 %s75, 1
        %s183 = smul.addr %s182, 8
        %s184 = scalar_lea.vmem [#allocation7], %s183
        // Predicated region
        $region37: #{tpu_custom_call.1} parent=27 // pred_check
          %p185 = pneg %p85
        $region38: #{tpu_custom_call.1} parent=27 // pred_check_branch
          %187 = sbr.rel (%p185) target = $region40
        $region39: #{tpu_custom_call.1} parent=27 // pred_region
          %189 = vsyncadd %s181, 0
          %s190 = smul.addr %s20, 8
          %s191 = scalar_lea.hbm %s2, %s190
          %s193 = sshll.u32 %s184, 4
          %s194 = int_to_ptr.vmem [resolvable:$true] %s193
          %s195 = sshll.u32 %s191, 4
          %s196 = int_to_ptr.hbm [resolvable:$true] %s195
          %198 = dma.vmem_to_hbm [thread:$0]  %s194, 128, %s196, %s181
        $region40: #{tpu_custom_call.1} parent=27 // pred_fallthru
          _
      $region28: #{tpu_custom_call.1} parent=5 // pred_fallthru
        _
      %p199 = scmp.le.s32.totalorder 2, %s15
      // Predicated region
      $region41: #{tpu_custom_call.1} parent=5 // pred_check
        %p200 = pneg %p199
      $region42: #{tpu_custom_call.1} parent=5 // pred_check_branch
        %202 = sbr.rel (%p200) target = $region44
      $region43: #{tpu_custom_call.1} parent=5 // pred_region
        %s203 = ssub.s32 %s15, 2
        // Predicated region
        $region45: #{tpu_custom_call.1} parent=43 // pred_check
          %p204 = pneg %p91
        $region46: #{tpu_custom_call.1} parent=43 // pred_check_branch
          %206 = sbr.rel (%p204) target = $region48
        $region47: #{tpu_custom_call.1} parent=43 // pred_region
          %s207 = sand.u32 %s76, 1
          %s208 = scalar_lea.sflag [#allocation4], %s207
          %s209 = sand.u32 %s76, 1
          %s210 = smul.addr %s209, 8
          %s211 = scalar_lea.vmem [#allocation7], %s210
          %213 = dma.done %s208, 128
        $region48: #{tpu_custom_call.1} parent=43 // pred_fallthru
          _
      $region44: #{tpu_custom_call.1} parent=5 // pred_fallthru
        _
    $region6: #{tpu_custom_call.1} parent=1 // loop_footer
      %s19 = sadd.s32 1, %s15
    $region7: #{tpu_custom_call.1} parent=1 // loop_footer_branch
      %14 = sbr.rel target = $region3
    $region8: #{tpu_custom_call.1} parent=1 // loop_exit
      _
    %214 = vsyncpa [#allocation3], 1
    %s215 = scalar_lea.sflag [#allocation3], 1
    %216 = vsyncpa %s215, 1
    %217 = vsyncpa [#allocation6], 1
    %s218 = scalar_lea.sflag [#allocation6], 1
    %219 = vsyncpa %s218, 1
    %220 = vsyncpa [#allocation4], 1
    %s221 = scalar_lea.sflag [#allocation4], 1
    %222 = vsyncpa %s221, 1

// kernel: _fused_mlp_forward.1
$region0: #{_fused_mlp_forward.1}
  #allocation0 [shape = 'u32[]', space=smem, size = 0x4, offset = 0x4, fixed_abs, tag = 'smem constant byte address 0x4 - core index']
  #allocation1 [shape = 'u32[72,128]{1,0:T(1,128)}', space=vmem, size = 0x9000, scoped, tag = 'internal scratch']
  %s0 = inlined_call_operand.hbm [shape: f32[8,128], index: 0, kind: input, shape index: {}]
  %s1 = inlined_call_operand.hbm [shape: f32[128,256], index: 1, kind: input, shape index: {}]
  %s2 = inlined_call_operand.hbm [shape: f32[256,128], index: 2, kind: input, shape index: {}]
  %s3 = inlined_call_operand.hbm [shape: f32[128,128], index: 3, kind: input, shape index: {}]
  %s4 = inlined_call_operand.hbm [shape: f32[128,128], index: 4, kind: input, shape index: {}]
  %s5 = inlined_call_operand.hbm [shape: f32[8,128], index: 5, kind: output, shape index: {}]
  %s6 = sld [smem:[#allocation0]]
  $region50: #{_fused_mlp_forward.1} parent=0
    _
  %s8 = ssub.s32 1, %s6
  %s9 = scalar_select 0, %s8, %s6
  $region1: #{_fused_mlp_forward.1} parent=0
    #allocation2 [shape = 'u8[4096]{0}', space=vmem, size = 0x1000, scoped, tag = 'input window, operand 0, single buffered']
    #allocation3 [shape = 's32[1]{0}', space=sflag, size = 0x4, scoped, tag = 'scoped memory for _fused_mlp_forward.1']
    #allocation4 [shape = 's32[1]{0}', space=sflag, size = 0x4, scoped, tag = 'scoped memory for _fused_mlp_forward.1']
    #allocation5 [shape = 'u8[131072]{0}', space=vmem, size = 0x20000, scoped, tag = 'input window, operand 1, single buffered']
    #allocation6 [shape = 's32[1]{0}', space=sflag, size = 0x4, scoped, tag = 'scoped memory for _fused_mlp_forward.1']
    #allocation7 [shape = 'u8[131072]{0}', space=vmem, size = 0x20000, scoped, tag = 'input window, operand 2, single buffered']
    #allocation8 [shape = 'u8[65536]{0}', space=vmem, size = 0x10000, scoped, tag = 'input window, operand 3, single buffered']
    #allocation9 [shape = 's32[1]{0}', space=sflag, size = 0x4, scoped, tag = 'scoped memory for _fused_mlp_forward.1']
    #allocation10 [shape = 'u8[65536]{0}', space=vmem, size = 0x10000, scoped, tag = 'input window, operand 4, single buffered']
    #allocation11 [shape = 'u8[4096]{0}', space=vmem, size = 0x1000, scoped, tag = 'output window, operand 0, single buffered']
    %10 = vsyncpa [#allocation3], 0
    %11 = vsyncpa [#allocation6], 0
    %12 = vsyncpa [#allocation9], 0
    %13 = vsyncpa [#allocation4], 0
    // Predicated region
    $region2: #{_fused_mlp_forward.1} parent=1 // pred_check
      _
    $region3: #{_fused_mlp_forward.1} parent=1 // pred_check_branch
      %15 = sbr.rel (0) target = $region5
    $region4: #{_fused_mlp_forward.1} parent=1 // pred_region
      %17 = vsyncadd [#allocation3], 0
      %s19 = sshll.u32 %s0, 4
      %s20 = int_to_ptr.hbm [resolvable:$true] %s19
      %s21 = sshll.u32 [#allocation2], 4
      %s22 = int_to_ptr.vmem [resolvable:$true] %s21
      %24 = dma.hbm_to_vmem [thread:$0]  %s20, 128, %s22, [#allocation3]
    $region5: #{_fused_mlp_forward.1} parent=1 // pred_fallthru
      _
    // Predicated region
    $region6: #{_fused_mlp_forward.1} parent=1 // pred_check
      _
    $region7: #{_fused_mlp_forward.1} parent=1 // pred_check_branch
      %26 = sbr.rel (0) target = $region9
    $region8: #{_fused_mlp_forward.1} parent=1 // pred_region
      %28 = vsyncadd [#allocation6], 0
      %s29 = sshll.u32 %s1, 4
      %s30 = int_to_ptr.hbm [resolvable:$true] %s29
      %s31 = sshll.u32 [#allocation5], 4
      %s32 = int_to_ptr.vmem [resolvable:$true] %s31
      %37 = dma.hbm_to_vmem [thread:$0]  %s30, 4096, %s32, [#allocation6], 256, 256, 16
    $region9: #{_fused_mlp_forward.1} parent=1 // pred_fallthru
      _
    // Predicated region
    $region10: #{_fused_mlp_forward.1} parent=1 // pred_check
      _
    $region11: #{_fused_mlp_forward.1} parent=1 // pred_check_branch
      %39 = sbr.rel (0) target = $region13
    $region12: #{_fused_mlp_forward.1} parent=1 // pred_region
      %41 = vsyncadd [#allocation6], 0
      %s42 = sshll.u32 %s2, 4
      %s43 = int_to_ptr.hbm [resolvable:$true] %s42
      %s44 = sshll.u32 [#allocation7], 4
      %s45 = int_to_ptr.vmem [resolvable:$true] %s44
      %50 = dma.hbm_to_vmem [thread:$0]  %s43, 4096, %s45, [#allocation6], 128, 128, 8
    $region13: #{_fused_mlp_forward.1} parent=1 // pred_fallthru
      _
    // Predicated region
    $region14: #{_fused_mlp_forward.1} parent=1 // pred_check
      _
    $region15: #{_fused_mlp_forward.1} parent=1 // pred_check_branch
      %52 = sbr.rel (0) target = $region17
    $region16: #{_fused_mlp_forward.1} parent=1 // pred_region
      %54 = vsyncadd [#allocation9], 0
      %s55 = sshll.u32 %s3, 4
      %s56 = int_to_ptr.hbm [resolvable:$true] %s55
      %s57 = sshll.u32 [#allocation8], 4
      %s58 = int_to_ptr.vmem [resolvable:$true] %s57
      %63 = dma.hbm_to_vmem [thread:$0]  %s56, 2048, %s58, [#allocation9], 128, 128, 8
    $region17: #{_fused_mlp_forward.1} parent=1 // pred_fallthru
      _
    // Predicated region
    $region18: #{_fused_mlp_forward.1} parent=1 // pred_check
      _
    $region19: #{_fused_mlp_forward.1} parent=1 // pred_check_branch
      %65 = sbr.rel (0) target = $region21
    $region20: #{_fused_mlp_forward.1} parent=1 // pred_region
      %67 = vsyncadd [#allocation9], 0
      %s68 = sshll.u32 %s4, 4
      %s69 = int_to_ptr.hbm [resolvable:$true] %s68
      %s70 = sshll.u32 [#allocation10], 4
      %s71 = int_to_ptr.vmem [resolvable:$true] %s70
      %76 = dma.hbm_to_vmem [thread:$0]  %s69, 2048, %s71, [#allocation9], 128, 128, 8
    $region21: #{_fused_mlp_forward.1} parent=1 // pred_fallthru
      _
    // Predicated region
    $region22: #{_fused_mlp_forward.1} parent=1 // pred_check
      _
    $region23: #{_fused_mlp_forward.1} parent=1 // pred_check_branch
      %78 = sbr.rel (0) target = $region25
    $region24: #{_fused_mlp_forward.1} parent=1 // pred_region
      %80 = dma.done [#allocation3], 128
    $region25: #{_fused_mlp_forward.1} parent=1 // pred_fallthru
      _
    // Predicated region
    $region26: #{_fused_mlp_forward.1} parent=1 // pred_check
      _
    $region27: #{_fused_mlp_forward.1} parent=1 // pred_check_branch
      %82 = sbr.rel (0) target = $region29
    $region28: #{_fused_mlp_forward.1} parent=1 // pred_region
      %84 = dma.done [#allocation6], 4096
    $region29: #{_fused_mlp_forward.1} parent=1 // pred_fallthru
      _
    // Predicated region
    $region30: #{_fused_mlp_forward.1} parent=1 // pred_check
      _
    $region31: #{_fused_mlp_forward.1} parent=1 // pred_check_branch
      %86 = sbr.rel (0) target = $region33
    $region32: #{_fused_mlp_forward.1} parent=1 // pred_region
      %88 = dma.done [#allocation6], 4096
    $region33: #{_fused_mlp_forward.1} parent=1 // pred_fallthru
      _
    // Predicated region
    $region34: #{_fused_mlp_forward.1} parent=1 // pred_check
      _
    $region35: #{_fused_mlp_forward.1} parent=1 // pred_check_branch
      %90 = sbr.rel (0) target = $region37
    $region36: #{_fused_mlp_forward.1} parent=1 // pred_region
      %92 = dma.done [#allocation9], 2048
    $region37: #{_fused_mlp_forward.1} parent=1 // pred_fallthru
      _
    // Predicated region
    $region38: #{_fused_mlp_forward.1} parent=1 // pred_check
      _
    $region39: #{_fused_mlp_forward.1} parent=1 // pred_check_branch
      %94 = sbr.rel (0) target = $region41
    $region40: #{_fused_mlp_forward.1} parent=1 // pred_region
      %96 = dma.done [#allocation9], 2048
    $region41: #{_fused_mlp_forward.1} parent=1 // pred_fallthru
      _
    %v97 = vld [vmem:[#allocation2] sm:$0xff]
    %v98 = vld [vmem:[#allocation5] sm:$0xff]
    %v99 = vld [vmem:[#allocation5 + $0x8] sm:$0xff]
    %v100 = vld [vmem:[#allocation5 + $0x10] sm:$0xff]
    %v101 = vld [vmem:[#allocation5 + $0x18] sm:$0xff]
    %v102 = vld [vmem:[#allocation5 + $0x20] sm:$0xff]
    %v103 = vld [vmem:[#allocation5 + $0x28] sm:$0xff]
    %v104 = vld [vmem:[#allocation5 + $0x30] sm:$0xff]
    %v105 = vld [vmem:[#allocation5 + $0x38] sm:$0xff]
    %v106 = vld [vmem:[#allocation5 + $0x40] sm:$0xff]
    %v107 = vld [vmem:[#allocation5 + $0x48] sm:$0xff]
    %v108 = vld [vmem:[#allocation5 + $0x50] sm:$0xff]
    %v109 = vld [vmem:[#allocation5 + $0x58] sm:$0xff]
    %v110 = vld [vmem:[#allocation5 + $0x60] sm:$0xff]
    %v111 = vld [vmem:[#allocation5 + $0x68] sm:$0xff]
    %v112 = vld [vmem:[#allocation5 + $0x70] sm:$0xff]
    %v113 = vld [vmem:[#allocation5 + $0x78] sm:$0xff]
    %v114 = vld [vmem:[#allocation5 + $0x80] sm:$0xff]
    %v115 = vld [vmem:[#allocation5 + $0x88] sm:$0xff]
    %v116 = vld [vmem:[#allocation5 + $0x90] sm:$0xff]
    %v117 = vld [vmem:[#allocation5 + $0x98] sm:$0xff]
    %v118 = vld [vmem:[#allocation5 + $0xa0] sm:$0xff]
    %v119 = vld [vmem:[#allocation5 + $0xa8] sm:$0xff]
    %v120 = vld [vmem:[#allocation5 + $0xb0] sm:$0xff]
    %v121 = vld [vmem:[#allocation5 + $0xb8] sm:$0xff]
    %v122 = vld [vmem:[#allocation5 + $0xc0] sm:$0xff]
    %v123 = vld [vmem:[#allocation5 + $0xc8] sm:$0xff]
    %v124 = vld [vmem:[#allocation5 + $0xd0] sm:$0xff]
    %v125 = vld [vmem:[#allocation5 + $0xd8] sm:$0xff]
    %v126 = vld [vmem:[#allocation5 + $0xe0] sm:$0xff]
    %v127 = vld [vmem:[#allocation5 + $0xe8] sm:$0xff]
    %v128 = vld [vmem:[#allocation5 + $0xf0] sm:$0xff]
    %v129 = vld [vmem:[#allocation5 + $0xf8] sm:$0xff]
    %130 = vmatpush.msra.mxu0 %v128
    %131 = vmatpush.msra.mxu0 %v126
    %132 = vmatpush.msra.mxu0 %v124
    %133 = vmatpush.msra.mxu0 %v122
    %134 = vmatpush.msra.mxu0 %v120
    %135 = vmatpush.msra.mxu0 %v118
    %136 = vmatpush.msra.mxu0 %v116
    %137 = vmatpush.msra.mxu0 %v114
    %138 = vmatpush.msra.mxu0 %v112
    %139 = vmatpush.msra.mxu0 %v110
    %140 = vmatpush.msra.mxu0 %v108
    %141 = vmatpush.msra.mxu0 %v106
    %142 = vmatpush.msra.mxu0 %v104
    %143 = vmatpush.msra.mxu0 %v102
    %144 = vmatpush.msra.mxu0 %v100
    %145 = vmatpush.msra.mxu0 %v98
    %146 = vmatmul.f32.gmra.mxu0 %v97
    %v147 = vpop.f32.mrf.mxu0
    %v148 = vadd.f32 0.0, %v147
    %149 = vdwg.mxu0
    %150 = vmatpush.msra.mxu0 %v129
    %151 = vmatpush.msra.mxu0 %v127
    %152 = vmatpush.msra.mxu0 %v125
    %153 = vmatpush.msra.mxu0 %v123
    %154 = vmatpush.msra.mxu0 %v121
    %155 = vmatpush.msra.mxu0 %v119
    %156 = vmatpush.msra.mxu0 %v117
    %157 = vmatpush.msra.mxu0 %v115
    %158 = vmatpush.msra.mxu0 %v113
    %159 = vmatpush.msra.mxu0 %v111
    %160 = vmatpush.msra.mxu0 %v109
    %161 = vmatpush.msra.mxu0 %v107
    %162 = vmatpush.msra.mxu0 %v105
    %163 = vmatpush.msra.mxu0 %v103
    %164 = vmatpush.msra.mxu0 %v101
    %165 = vmatpush.msra.mxu0 %v99
    %166 = vmatmul.f32.gmra.mxu0 %v97
    %v167 = vpop.f32.mrf.mxu0
    %v168 = vadd.f32 0.0, %v167
    %169 = vdwg.mxu0
    %v170 = vld [vmem:[#allocation7] sm:$0xff]
    %v171 = vld [vmem:[#allocation7 + $0x8] sm:$0xff]
    %v172 = vld [vmem:[#allocation7 + $0x10] sm:$0xff]
    %v173 = vld [vmem:[#allocation7 + $0x18] sm:$0xff]
    %v174 = vld [vmem:[#allocation7 + $0x20] sm:$0xff]
    %v175 = vld [vmem:[#allocation7 + $0x28] sm:$0xff]
    %v176 = vld [vmem:[#allocation7 + $0x30] sm:$0xff]
    %v177 = vld [vmem:[#allocation7 + $0x38] sm:$0xff]
    %v178 = vld [vmem:[#allocation7 + $0x40] sm:$0xff]
    %v179 = vld [vmem:[#allocation7 + $0x48] sm:$0xff]
    %v180 = vld [vmem:[#allocation7 + $0x50] sm:$0xff]
    %v181 = vld [vmem:[#allocation7 + $0x58] sm:$0xff]
    %v182 = vld [vmem:[#allocation7 + $0x60] sm:$0xff]
    %v183 = vld [vmem:[#allocation7 + $0x68] sm:$0xff]
    %v184 = vld [vmem:[#allocation7 + $0x70] sm:$0xff]
    %v185 = vld [vmem:[#allocation7 + $0x78] sm:$0xff]
    %v186 = vld [vmem:[#allocation7 + $0x80] sm:$0xff]
    %v187 = vld [vmem:[#allocation7 + $0x88] sm:$0xff]
    %v188 = vld [vmem:[#allocation7 + $0x90] sm:$0xff]
    %v189 = vld [vmem:[#allocation7 + $0x98] sm:$0xff]
    %v190 = vld [vmem:[#allocation7 + $0xa0] sm:$0xff]
    %v191 = vld [vmem:[#allocation7 + $0xa8] sm:$0xff]
    %v192 = vld [vmem:[#allocation7 + $0xb0] sm:$0xff]
    %v193 = vld [vmem:[#allocation7 + $0xb8] sm:$0xff]
    %v194 = vld [vmem:[#allocation7 + $0xc0] sm:$0xff]
    %v195 = vld [vmem:[#allocation7 + $0xc8] sm:$0xff]
    %v196 = vld [vmem:[#allocation7 + $0xd0] sm:$0xff]
    %v197 = vld [vmem:[#allocation7 + $0xd8] sm:$0xff]
    %v198 = vld [vmem:[#allocation7 + $0xe0] sm:$0xff]
    %v199 = vld [vmem:[#allocation7 + $0xe8] sm:$0xff]
    %v200 = vld [vmem:[#allocation7 + $0xf0] sm:$0xff]
    %v201 = vld [vmem:[#allocation7 + $0xf8] sm:$0xff]
    %202 = vmatpush.msra.mxu0 %v185
    %203 = vmatpush.msra.mxu0 %v184
    %204 = vmatpush.msra.mxu0 %v183
    %205 = vmatpush.msra.mxu0 %v182
    %206 = vmatpush.msra.mxu0 %v181
    %207 = vmatpush.msra.mxu0 %v180
    %208 = vmatpush.msra.mxu0 %v179
    %209 = vmatpush.msra.mxu0 %v178
    %210 = vmatpush.msra.mxu0 %v177
    %211 = vmatpush.msra.mxu0 %v176
    %212 = vmatpush.msra.mxu0 %v175
    %213 = vmatpush.msra.mxu0 %v174
    %214 = vmatpush.msra.mxu0 %v173
    %215 = vmatpush.msra.mxu0 %v172
    %216 = vmatpush.msra.mxu0 %v171
    %217 = vmatpush.msra.mxu0 %v170
    %218 = vmatmul.f32.gmra.mxu0 %v148
    %v219 = vpop.f32.mrf.mxu0
    %v220 = vadd.f32 0.0, %v219
    %221 = vdwg.mxu0
    %222 = vmatpush.msra.mxu0 %v201
    %223 = vmatpush.msra.mxu0 %v200
    %224 = vmatpush.msra.mxu0 %v199
    %225 = vmatpush.msra.mxu0 %v198
    %226 = vmatpush.msra.mxu0 %v197
    %227 = vmatpush.msra.mxu0 %v196
    %228 = vmatpush.msra.mxu0 %v195
    %229 = vmatpush.msra.mxu0 %v194
    %230 = vmatpush.msra.mxu0 %v193
    %231 = vmatpush.msra.mxu0 %v192
    %232 = vmatpush.msra.mxu0 %v191
    %233 = vmatpush.msra.mxu0 %v190
    %234 = vmatpush.msra.mxu0 %v189
    %235 = vmatpush.msra.mxu0 %v188
    %236 = vmatpush.msra.mxu0 %v187
    %237 = vmatpush.msra.mxu0 %v186
    %238 = vmatmul.f32.gmra.mxu0 %v168
    %v239 = vpop.f32.mrf.mxu0
    %v240 = vadd.f32 %v220, %v239
    %241 = vdwg.mxu0
    %v242 = vld [vmem:[#allocation8] sm:$0xff]
    %v243 = vld [vmem:[#allocation8 + $0x8] sm:$0xff]
    %v244 = vld [vmem:[#allocation8 + $0x10] sm:$0xff]
    %v245 = vld [vmem:[#allocation8 + $0x18] sm:$0xff]
    %v246 = vld [vmem:[#allocation8 + $0x20] sm:$0xff]
    %v247 = vld [vmem:[#allocation8 + $0x28] sm:$0xff]
    %v248 = vld [vmem:[#allocation8 + $0x30] sm:$0xff]
    %v249 = vld [vmem:[#allocation8 + $0x38] sm:$0xff]
    %v250 = vld [vmem:[#allocation8 + $0x40] sm:$0xff]
    %v251 = vld [vmem:[#allocation8 + $0x48] sm:$0xff]
    %v252 = vld [vmem:[#allocation8 + $0x50] sm:$0xff]
    %v253 = vld [vmem:[#allocation8 + $0x58] sm:$0xff]
    %v254 = vld [vmem:[#allocation8 + $0x60] sm:$0xff]
    %v255 = vld [vmem:[#allocation8 + $0x68] sm:$0xff]
    %v256 = vld [vmem:[#allocation8 + $0x70] sm:$0xff]
    %v257 = vld [vmem:[#allocation8 + $0x78] sm:$0xff]
    %258 = vmatpush.msra.mxu0 %v257
    %259 = vmatpush.msra.mxu0 %v256
    %260 = vmatpush.msra.mxu0 %v255
    %261 = vmatpush.msra.mxu0 %v254
    %262 = vmatpush.msra.mxu0 %v253
    %263 = vmatpush.msra.mxu0 %v252
    %264 = vmatpush.msra.mxu0 %v251
    %265 = vmatpush.msra.mxu0 %v250
    %266 = vmatpush.msra.mxu0 %v249
    %267 = vmatpush.msra.mxu0 %v248
    %268 = vmatpush.msra.mxu0 %v247
    %269 = vmatpush.msra.mxu0 %v246
    %270 = vmatpush.msra.mxu0 %v245
    %271 = vmatpush.msra.mxu0 %v244
    %272 = vmatpush.msra.mxu0 %v243
    %273 = vmatpush.msra.mxu0 %v242
    %274 = vmatmul.f32.gmra.mxu0 %v240
    %v275 = vpop.f32.mrf.mxu0
    %v276 = vadd.f32 0.0, %v275
    %277 = vdwg.mxu0
    %v278 = vld [vmem:[#allocation10] sm:$0xff]
    %v279 = vld [vmem:[#allocation10 + $0x8] sm:$0xff]
    %v280 = vld [vmem:[#allocation10 + $0x10] sm:$0xff]
    %v281 = vld [vmem:[#allocation10 + $0x18] sm:$0xff]
    %v282 = vld [vmem:[#allocation10 + $0x20] sm:$0xff]
    %v283 = vld [vmem:[#allocation10 + $0x28] sm:$0xff]
    %v284 = vld [vmem:[#allocation10 + $0x30] sm:$0xff]
    %v285 = vld [vmem:[#allocation10 + $0x38] sm:$0xff]
    %v286 = vld [vmem:[#allocation10 + $0x40] sm:$0xff]
    %v287 = vld [vmem:[#allocation10 + $0x48] sm:$0xff]
    %v288 = vld [vmem:[#allocation10 + $0x50] sm:$0xff]
    %v289 = vld [vmem:[#allocation10 + $0x58] sm:$0xff]
    %v290 = vld [vmem:[#allocation10 + $0x60] sm:$0xff]
    %v291 = vld [vmem:[#allocation10 + $0x68] sm:$0xff]
    %v292 = vld [vmem:[#allocation10 + $0x70] sm:$0xff]
    %v293 = vld [vmem:[#allocation10 + $0x78] sm:$0xff]
    %294 = vmatpush.msra.mxu0 %v293
    %295 = vmatpush.msra.mxu0 %v292
    %296 = vmatpush.msra.mxu0 %v291
    %297 = vmatpush.msra.mxu0 %v290
    %298 = vmatpush.msra.mxu0 %v289
    %299 = vmatpush.msra.mxu0 %v288
    %300 = vmatpush.msra.mxu0 %v287
    %301 = vmatpush.msra.mxu0 %v286
    %302 = vmatpush.msra.mxu0 %v285
    %303 = vmatpush.msra.mxu0 %v284
    %304 = vmatpush.msra.mxu0 %v283
    %305 = vmatpush.msra.mxu0 %v282
    %306 = vmatpush.msra.mxu0 %v281
    %307 = vmatpush.msra.mxu0 %v280
    %308 = vmatpush.msra.mxu0 %v279
    %309 = vmatpush.msra.mxu0 %v278
    %310 = vmatmul.f32.gmra.mxu0 %v276
    %v311 = vpop.f32.mrf.mxu0
    %v312 = vadd.f32 0.0, %v311
    %313 = vdwg.mxu0
    %314 = vst [vmem:[#allocation11] sm:$0xff] %v312
    // Predicated region
    $region42: #{_fused_mlp_forward.1} parent=1 // pred_check
      _
    $region43: #{_fused_mlp_forward.1} parent=1 // pred_check_branch
      %316 = sbr.rel (0) target = $region45
    $region44: #{_fused_mlp_forward.1} parent=1 // pred_region
      %318 = vsyncadd [#allocation4], 0
      %s320 = sshll.u32 [#allocation11], 4
      %s321 = int_to_ptr.vmem [resolvable:$true] %s320
      %s322 = sshll.u32 %s5, 4
      %s323 = int_to_ptr.hbm [resolvable:$true] %s322
      %325 = dma.vmem_to_hbm [thread:$0]  %s321, 128, %s323, [#allocation4]
    $region45: #{_fused_mlp_forward.1} parent=1 // pred_fallthru
      _
    // Predicated region
    $region46: #{_fused_mlp_forward.1} parent=1 // pred_check
      _
    $region47: #{_fused_mlp_forward.1} parent=1 // pred_check_branch
      %327 = sbr.rel (0) target = $region49
    $region48: #{_fused_mlp_forward.1} parent=1 // pred_region
      %329 = dma.done [#allocation4], 128
    $region49: #{_fused_mlp_forward.1} parent=1 // pred_fallthru
      _
    %330 = vsyncpa [#allocation3], 1
    %331 = vsyncpa [#allocation6], 1
    %332 = vsyncpa [#allocation9], 1
    %333 = vsyncpa [#allocation4], 1

</llo_original>
